<compile_context>
chip_gen: v6e
topology: v6e:2x2x1
jax: 0.10.0
libtpu: 0.0.40
codegen_flags: <defaults>
</compile_context>

<pallas_src>
import functools

import jax
import jax.numpy as jnp
import numpy as np
from jax import lax
from jax.experimental import pallas as pl
from jax.experimental.pallas import tpu as pltpu


def _dirichlet_eval_kernel(x_ref, w_ref, b_ref, out_ref):
    """Eval mode.

    x_ref  : (T, K_pad) raw logits tile (only the first K lanes are real data)
    w_ref  : (K, K) nn.Linear weight (out, in)
    b_ref  : (K, 1) bias
    out_ref: (2, T) lane-dense packed {row 0: confidence, row 1: prediction}
    """
    K = w_ref.shape[0]
    W = w_ref[...].astype(jnp.float32)
    b = b_ref[...].astype(jnp.float32)

    # One aligned XLU transpose (T, K_pad) -> (K_pad, T), then slice the real
    # classes; everything downstream is lane-dense (classes on sublanes).
    xt = jnp.transpose(x_ref[...].astype(jnp.float32), (1, 0))[:K, :]   # (K, T)
    T = xt.shape[1]

    # ---- fused log-softmax over classes (sublane axis) ----------------------
    x_max = jnp.max(xt, axis=0, keepdims=True)                          # (1, T)
    xs = xt - x_max
    ln = xs - jnp.log(jnp.sum(jnp.exp(xs), axis=0, keepdims=True))      # (K, T)

    # ---- linear: z^T = W @ ln^T + b  (MXU, no weight transpose) -------------
    z = jnp.dot(W, ln, preferred_element_type=jnp.float32) + b          # (K, T)

    # ---- second softmax: max prob = exp(z_max - z_max)/denom = 1/denom ------
    z_max = jnp.max(z, axis=0, keepdims=True)                           # (1, T)
    denom = jnp.sum(jnp.exp(z - z_max), axis=0, keepdims=True)          # (1, T)
    conf = 1.0 / denom                                                  # exact divide

    cls = lax.broadcasted_iota(jnp.int32, (K, T), 0)
    # first index achieving the max (matches torch.max(., 1) tie-breaking)
    pred = jnp.min(jnp.where(z == z_max, cls, K), axis=0, keepdims=True)  # (1, T)

    # single packed lane-dense writeback (pred rides along exactly as f32)
    out_ref[...] = jnp.concatenate([conf, pred.astype(jnp.float32)], axis=0)


def _dirichlet_train_kernel(x_ref, w_ref, b_ref, y_ref, ce_ref):
    """Training mode: per-sample cross-entropy, lane-dense.

    x_ref : (T, K_pad) raw logits tile
    w_ref : (K, K), b_ref: (K, 1), y_ref: (1, T) int32 labels
    ce_ref: (1, T) per-sample CE (penalties added once in the wrapper)
    """
    K = w_ref.shape[0]
    W = w_ref[...].astype(jnp.float32)
    b = b_ref[...].astype(jnp.float32)
    y = y_ref[...]                                                      # (1, T)

    xt = jnp.transpose(x_ref[...].astype(jnp.float32), (1, 0))[:K, :]   # (K, T)
    T = xt.shape[1]

    x_max = jnp.max(xt, axis=0, keepdims=True)
    xs = xt - x_max
    ln = xs - jnp.log(jnp.sum(jnp.exp(xs), axis=0, keepdims=True))      # (K, T)

    z = jnp.dot(W, ln, preferred_element_type=jnp.float32) + b          # (K, T)

    z_max = jnp.max(z, axis=0, keepdims=True)
    lse = z_max + jnp.log(jnp.sum(jnp.exp(z - z_max), axis=0, keepdims=True))

    cls = lax.broadcasted_iota(jnp.int32, (K, T), 0)
    onehot = (cls == y).astype(jnp.float32)                             # (K, T)
    z_true = jnp.sum(z * onehot, axis=0, keepdims=True)                 # (1, T)
    ce_ref[...] = lse - z_true                                          # (1, T)


def _round_up(n, m):
    return ((n + m - 1) // m) * m


@functools.partial(jax.jit, static_argnames=("training", "tile_n"))
def dirichlet_forward(x, W, b, labels, training=False, tile_n=4096):
    """x: (N, K) logits (any float dtype), W: (K, K), b: (K,), labels: (N,) ints."""
    N, K = x.shape
    k_pad = _round_up(K, 128)   # free: the VMEM lane dim pads to 128 regardless

    # Batch tile (lane axis). Big tiles amortize the ~0.35us/step fixed cost;
    # cap so the double-buffered f32 x tile stays well inside scoped VMEM, and
    # keep >= 2 grid steps for larger batches so the "parallel" axis can use
    # both v7x TensorCores (extra cost on 1-TC chips is ~one 0.35us step).
    max_t = max(128, (((8 * 1024 * 1024) // (k_pad * 4)) // 128) * 128)
    t = max(128, min(tile_n, _round_up(N, 128), max_t))
    if N > 256 and pl.cdiv(N, t) < 2:
        t = _round_up(pl.cdiv(N, 2), 128)
    num_tiles = pl.cdiv(N, t)

    Wf = W.astype(jnp.float32)
    bf = b.reshape(K, 1).astype(jnp.float32)

    x_spec = pl.BlockSpec((t, k_pad), lambda i: (i, 0))   # contiguous rows of x
    w_spec = pl.BlockSpec((K, K), lambda i: (0, 0))       # resident
    b_spec = pl.BlockSpec((K, 1), lambda i: (0, 0))       # resident
    params = pltpu.CompilerParams(dimension_semantics=("parallel",))

    if training:
        yt = labels.astype(jnp.int32).reshape(1, N)
        ce = pl.pallas_call(
            _dirichlet_train_kernel,
            grid=(num_tiles,),
            out_shape=jax.ShapeDtypeStruct((1, N), jnp.float32),
            in_specs=[x_spec, w_spec, b_spec,
                      pl.BlockSpec((1, t), lambda i: (0, i))],
            out_specs=pl.BlockSpec((1, t), lambda i: (0, i)),
            compiler_params=params,
        )(x, Wf, bf, yt)
        # ragged-tile tail lanes never reach HBM, so a plain sum is exact.
        ce_mean = jnp.sum(ce) / N
        w_off = jnp.sum(Wf * Wf) - jnp.sum(jnp.diagonal(Wf) ** 2)   # off-diagonal
        miu = 0.001
        # NB: the reference multiplies W_sum by k (NUM_CLASS), not lamda.
        return ce_mean + K * w_off + miu * jnp.sum(bf * bf)

    packed = pl.pallas_call(
        _dirichlet_eval_kernel,
        grid=(num_tiles,),
        out_shape=jax.ShapeDtypeStruct((2, N), jnp.float32),
        in_specs=[x_spec, w_spec, b_spec],
        out_specs=pl.BlockSpec((2, t), lambda i: (0, i)),
        compiler_params=params,
    )(x, Wf, bf)

    confidences = packed[0]
    predictions = packed[1].astype(jnp.int32)   # small ints, exact in f32
    hits = predictions == labels.astype(jnp.int32)
    # eval path glue (matches torch: sort confidences ascending, reorder hits)
    order = jnp.argsort(confidences)
    return confidences[order], hits[order], True


def _ref_forward(x, W, b, labels, training):
    """Pure-JAX reference of the torch module (f32)."""
    xf = x.astype(jnp.float32)
    ln = jax.nn.log_softmax(xf, axis=1)
    z = ln @ W.astype(jnp.float32).T + b.astype(jnp.float32)
    N, K = x.shape
    if training:
        lse = jax.nn.logsumexp(z, axis=1)
        z_true = jnp.take_along_axis(z, labels.astype(jnp.int32)[:, None], axis=1)[:, 0]
        ce = jnp.mean(lse - z_true)
        Wf = W.astype(jnp.float32)
        w_off = jnp.sum(Wf * Wf) - jnp.sum(jnp.diagonal(Wf) ** 2)
        return ce + K * w_off + 0.001 * jnp.sum(b.astype(jnp.float32) ** 2)
    prob = jax.nn.softmax(z, axis=1)
    conf = jnp.max(prob, axis=1)
    pred = jnp.argmax(prob, axis=1)
    hits = pred == labels.astype(jnp.int32)
    order = jnp.argsort(conf)
    return conf[order], hits[order], True


if __name__ == "__main__":
    key = jax.random.PRNGKey(0)

    # ---- case 1: small, deterministic init per _init_weight() --------------
    N, K = 16, 8
    kx, ky = jax.random.split(key)
    x = jax.random.normal(kx, (N, K), dtype=jnp.float32) * 3.0
    labels = jax.random.randint(ky, (N,), 0, K, dtype=jnp.int32)
    W = jnp.eye(K, dtype=jnp.float32)        # nn.init.eye_
    b = jnp.zeros((K,), dtype=jnp.float32)   # nn.init.zeros_

    cali_conf, hits, _ = dirichlet_forward(x, W, b, labels, training=False)
    loss = dirichlet_forward(x, W, b, labels, training=True)
    jax.block_until_ready((cali_conf, hits, loss))

    ref_conf, ref_hits, _ = _ref_forward(x, W, b, labels, False)
    ref_loss = _ref_forward(x, W, b, labels, True)
    np.testing.assert_allclose(np.asarray(cali_conf), np.asarray(ref_conf),
                               rtol=1e-5, atol=1e-5)
    np.testing.assert_allclose(float(loss), float(ref_loss), rtol=1e-5, atol=1e-5)
    assert int(jnp.sum(hits)) == int(jnp.sum(ref_hits))

    # ---- case 2: multi-tile grid, ragged last tile, K not multiple of 8 -----
    N2, K2 = 1000, 10
    k1, k2, k3, k4 = jax.random.split(key, 4)
    x2 = jax.random.normal(k1, (N2, K2), dtype=jnp.float32) * 2.0
    labels2 = jax.random.randint(k2, (N2,), 0, K2, dtype=jnp.int32)
    W2 = jnp.eye(K2, dtype=jnp.float32) + 0.01 * jax.random.normal(k3, (K2, K2))
    b2 = 0.01 * jax.random.normal(k4, (K2,), dtype=jnp.float32)

    conf2, hits2, _ = dirichlet_forward(x2, W2, b2, labels2, training=False,
                                        tile_n=512)
    loss2 = dirichlet_forward(x2, W2, b2, labels2, training=True, tile_n=512)
    jax.block_until_ready((conf2, hits2, loss2))

    ref_conf2, ref_hits2, _ = _ref_forward(x2, W2, b2, labels2, False)
    ref_loss2 = _ref_forward(x2, W2, b2, labels2, True)
    np.testing.assert_allclose(np.asarray(conf2), np.asarray(ref_conf2),
                               rtol=1e-4, atol=1e-5)
    np.testing.assert_allclose(float(loss2), float(ref_loss2), rtol=1e-4, atol=1e-5)
    assert int(jnp.sum(hits2)) == int(jnp.sum(ref_hits2))

    print("KERNEL_OK")
</pallas_src>

<mosaic_0001>
module attributes {stable_mosaic.version = 11 : i64} {
  func.func @_dirichlet_eval_kernel(%arg0: i32, %arg1: memref<128x128xf32, #tpu.memory_space<vmem>>, %arg2: memref<8x8xf32, #tpu.memory_space<vmem>>, %arg3: memref<8x1xf32, #tpu.memory_space<vmem>>, %arg4: memref<2x128xf32, #tpu.memory_space<vmem>>) attributes {dimension_semantics = [#tpu.dimension_semantics<parallel>], iteration_bounds = array<i64: 1>, scalar_prefetch = 0 : i64, scratch_operands = 0 : i64, tpu.core_type = #tpu.core_type<tc>, window_params = [{transform_indices = @transform_0, window_bounds = array<i64: 128, 128>}, {pipeline_mode = #tpu.pipeline_mode<synchronous>, transform_indices = @transform_1, window_bounds = array<i64: 8, 8>}, {pipeline_mode = #tpu.pipeline_mode<synchronous>, transform_indices = @transform_2, window_bounds = array<i64: 8, 1>}, {transform_indices = @transform_3, window_bounds = array<i64: 2, 128>}]} {
    %c0 = arith.constant 0 : index
    %c0_0 = arith.constant 0 : index
    %0 = vector.load %arg2[%c0, %c0_0] : memref<8x8xf32, #tpu.memory_space<vmem>>, vector<8x8xf32>
    %c0_1 = arith.constant 0 : index
    %c0_2 = arith.constant 0 : index
    %1 = vector.load %arg3[%c0_1, %c0_2] : memref<8x1xf32, #tpu.memory_space<vmem>>, vector<8x1xf32>
    %c0_3 = arith.constant 0 : index
    %c0_4 = arith.constant 0 : index
    %2 = vector.load %arg1[%c0_3, %c0_4] : memref<128x128xf32, #tpu.memory_space<vmem>>, vector<128x128xf32>
    %3 = tpu.transpose %2, [1, 0] : vector<128x128xf32> -> vector<128x128xf32>
    %4 = vector.extract_strided_slice %3 {offsets = [0, 0], sizes = [8, 128], strides = [1, 1]} : vector<128x128xf32> to vector<8x128xf32>
    %cst = arith.constant dense<0xFF800000> : vector<128xf32>
    %5 = vector.multi_reduction <maximumf>, %4, %cst [0] : vector<8x128xf32> to vector<128xf32>
    %6 = vector.shape_cast %5 : vector<128xf32> to vector<1x128xf32>
    %7 = vector.broadcast %6 : vector<1x128xf32> to vector<8x128xf32>
    %8 = arith.subf %4, %7 : vector<8x128xf32>
    %9 = math.exp %8 : vector<8x128xf32>
    %cst_5 = arith.constant dense<0.000000e+00> : vector<128xf32>
    %10 = vector.multi_reduction <add>, %9, %cst_5 [0] : vector<8x128xf32> to vector<128xf32>
    %11 = vector.shape_cast %10 : vector<128xf32> to vector<1x128xf32>
    %12 = math.log %11 : vector<1x128xf32>
    %13 = vector.broadcast %12 : vector<1x128xf32> to vector<8x128xf32>
    %14 = arith.subf %8, %13 : vector<8x128xf32>
    %cst_6 = arith.constant dense<0.000000e+00> : vector<8x128xf32>
    %15 = tpu.matmul %0, %14, %cst_6 {dimension_numbers = #tpu.dot_dimension_numbers<[1], [0], [0], [1], [0, 0, 1, 1], [], []>} : vector<8x8xf32>, vector<8x128xf32>, vector<8x128xf32> -> vector<8x128xf32>
    %16 = vector.broadcast %1 : vector<8x1xf32> to vector<8x128xf32>
    %17 = arith.addf %15, %16 : vector<8x128xf32>
    %cst_7 = arith.constant dense<0xFF800000> : vector<128xf32>
    %18 = vector.multi_reduction <maximumf>, %17, %cst_7 [0] : vector<8x128xf32> to vector<128xf32>
    %19 = vector.shape_cast %18 : vector<128xf32> to vector<1x128xf32>
    %20 = vector.broadcast %19 : vector<1x128xf32> to vector<8x128xf32>
    %21 = arith.subf %17, %20 : vector<8x128xf32>
    %22 = math.exp %21 : vector<8x128xf32>
    %cst_8 = arith.constant dense<0.000000e+00> : vector<128xf32>
    %23 = vector.multi_reduction <add>, %22, %cst_8 [0] : vector<8x128xf32> to vector<128xf32>
    %24 = vector.shape_cast %23 : vector<128xf32> to vector<1x128xf32>
    %cst_9 = arith.constant 1.000000e+00 : f32
    %25 = vector.broadcast %cst_9 : f32 to vector<1x128xf32>
    %26 = arith.divf %25, %24 : vector<1x128xf32>
    %27 = tpu.iota {dimensions = array<i32: 0>} : vector<8x128xi32>
    %28 = vector.broadcast %19 : vector<1x128xf32> to vector<8x128xf32>
    %29 = arith.cmpf oeq, %17, %28 : vector<8x128xf32>
    %c8_i32 = arith.constant 8 : i32
    %30 = vector.broadcast %c8_i32 : i32 to vector<8x128xi32>
    %31 = arith.select %29, %27, %30 : vector<8x128xi1>, vector<8x128xi32>
    %cst_10 = arith.constant dense<2147483647> : vector<128xi32>
    %32 = vector.multi_reduction <minsi>, %31, %cst_10 [0] : vector<8x128xi32> to vector<128xi32>
    %33 = vector.shape_cast %32 : vector<128xi32> to vector<1x128xi32>
    %34 = arith.sitofp %33 : vector<1x128xi32> to vector<1x128xf32>
    %35 = tpu.concatenate %26, %34 in 0 : vector<1x128xf32>, vector<1x128xf32> -> vector<2x128xf32>
    %c0_11 = arith.constant 0 : index
    %c0_12 = arith.constant 0 : index
    %36 = vector.load %arg4[%c0_11, %c0_12] : memref<2x128xf32, #tpu.memory_space<vmem>>, vector<2x128xf32>
    tpu.vector_store %arg4[%c0_11, %c0_12], %35 {strides = array<i32>} : memref<2x128xf32, #tpu.memory_space<vmem>>, vector<2x128xf32>,
    return
  }
  func.func @transform_0(%arg0: i32) -> (i32, i32) {
    %c0_i32 = arith.constant 0 : i32
    %c0_i32_0 = arith.constant 0 : i32
    return %arg0, %c0_i32 : i32, i32
  }
  func.func @transform_1(%arg0: i32) -> (i32, i32) {
    %c0_i32 = arith.constant 0 : i32
    %c0_i32_0 = arith.constant 0 : i32
    %c0_i32_1 = arith.constant 0 : i32
    return %c0_i32, %c0_i32_0 : i32, i32
  }
  func.func @transform_2(%arg0: i32) -> (i32, i32) {
    %c0_i32 = arith.constant 0 : i32
    %c0_i32_0 = arith.constant 0 : i32
    %c0_i32_1 = arith.constant 0 : i32
    return %c0_i32, %c0_i32_0 : i32, i32
  }
  func.func @transform_3(%arg0: i32) -> (i32, i32) {
    %c0_i32 = arith.constant 0 : i32
    %c0_i32_0 = arith.constant 0 : i32
    return %c0_i32, %arg0 : i32, i32
  }
}

</mosaic_0001>

<llo_original>
// kernel: dirichlet_forward.1
$region0: #{dirichlet_forward.1}
  #allocation0 [shape = 'u32[]', space=smem, size = 0x4, offset = 0x4, fixed_abs, tag = 'smem constant byte address 0x4 - core index']
  #allocation1 [shape = 'u32[144,128]{1,0:T(1,128)}', space=vmem, size = 0x12000, scoped, tag = 'internal scratch']
  %s0 = inlined_call_operand.vmem [shape: f32[16,8], index: 0, kind: input, shape index: {}]
  %s1 = inlined_call_operand.vmem [shape: f32[8,8], index: 1, kind: input, shape index: {}]
  %s2 = inlined_call_operand.vmem [shape: f32[8,1], index: 2, kind: input, shape index: {}]
  %s3 = inlined_call_operand.vmem [shape: f32[2,16], index: 3, kind: output, shape index: {}]
  %s4 = sld [smem:[#allocation0]]
  $region22: #{dirichlet_forward.1} parent=0
    _
  %s6 = ssub.s32 1, %s4
  %s7 = scalar_select 0, %s6, %s4
  // Predicated region
  $region2: #{dirichlet_forward.1} parent=0 // pred_check
    _
  $region3: #{dirichlet_forward.1} parent=0 // pred_check_branch
    %9 = sbr.rel (0) target = $region5
  $region4: #{dirichlet_forward.1} parent=0 // pred_region
    _
  $region5: #{dirichlet_forward.1} parent=0 // pred_fallthru
    _
  // Predicated region
  $region6: #{dirichlet_forward.1} parent=0 // pred_check
    _
  $region7: #{dirichlet_forward.1} parent=0 // pred_check_branch
    %11 = sbr.rel (0) target = $region9
  $region8: #{dirichlet_forward.1} parent=0 // pred_region
    _
  $region9: #{dirichlet_forward.1} parent=0 // pred_fallthru
    _
  // Predicated region
  $region10: #{dirichlet_forward.1} parent=0 // pred_check
    _
  $region11: #{dirichlet_forward.1} parent=0 // pred_check_branch
    %13 = sbr.rel (0) target = $region13
  $region12: #{dirichlet_forward.1} parent=0 // pred_region
    _
  $region13: #{dirichlet_forward.1} parent=0 // pred_fallthru
    _
  %v14 = vld [vmem:[%s1] sm:$0xff]
  %v15 = vld [vmem:[%s2] sm:$0xff]
  %v16 = vld [vmem:[%s0] sm:$0xff]
  %v17 = vld [vmem:[%s0 + $0x8] sm:$0xff]
  %v18 = vld [vmem:[%s0 + $0x10] sm:$0xff]
  %v19 = vld [vmem:[%s0 + $0x18] sm:$0xff]
  %v20 = vld [vmem:[%s0 + $0x20] sm:$0xff]
  %v21 = vld [vmem:[%s0 + $0x28] sm:$0xff]
  %v22 = vld [vmem:[%s0 + $0x30] sm:$0xff]
  %v23 = vld [vmem:[%s0 + $0x38] sm:$0xff]
  %v24 = vld [vmem:[%s0 + $0x40] sm:$0xff]
  %v25 = vld [vmem:[%s0 + $0x48] sm:$0xff]
  %v26 = vld [vmem:[%s0 + $0x50] sm:$0xff]
  %v27 = vld [vmem:[%s0 + $0x58] sm:$0xff]
  %v28 = vld [vmem:[%s0 + $0x60] sm:$0xff]
  %v29 = vld [vmem:[%s0 + $0x68] sm:$0xff]
  %v30 = vld [vmem:[%s0 + $0x70] sm:$0xff]
  %v31 = vld [vmem:[%s0 + $0x78] sm:$0xff]
  %32 = vxpose.xlu0.b32.start [1/16] %v16, 128
  %33 = vxpose.xlu0.b32.cont [2/16] %v17, 128
  %34 = vxpose.xlu0.b32.cont [3/16] %v18, 128
  %35 = vxpose.xlu0.b32.cont [4/16] %v19, 128
  %36 = vxpose.xlu0.b32.cont [5/16] %v20, 128
  %37 = vxpose.xlu0.b32.cont [6/16] %v21, 128
  %38 = vxpose.xlu0.b32.cont [7/16] %v22, 128
  %39 = vxpose.xlu0.b32.cont [8/16] %v23, 128
  %40 = vxpose.xlu0.b32.cont [9/16] %v24, 128
  %41 = vxpose.xlu0.b32.cont [10/16] %v25, 128
  %42 = vxpose.xlu0.b32.cont [11/16] %v26, 128
  %43 = vxpose.xlu0.b32.cont [12/16] %v27, 128
  %44 = vxpose.xlu0.b32.cont [13/16] %v28, 128
  %45 = vxpose.xlu0.b32.cont [14/16] %v29, 128
  %46 = vxpose.xlu0.b32.cont [15/16] %v30, 128
  %47 = vxpose.xlu0.b32.end [16/16] %v31, 128
  %v48 = vpop.trf.xlu0
  %v49 = vpop.trf.xlu0
  %v50 = vpop.trf.xlu0
  %v51 = vpop.trf.xlu0
  %v52 = vpop.trf.xlu0
  %v53 = vpop.trf.xlu0
  %v54 = vpop.trf.xlu0
  %v55 = vpop.trf.xlu0
  %v56 = vpop.trf.xlu0
  %v57 = vpop.trf.xlu0
  %v58 = vpop.trf.xlu0
  %v59 = vpop.trf.xlu0
  %v60 = vpop.trf.xlu0
  %v61 = vpop.trf.xlu0
  %v62 = vpop.trf.xlu0
  %v63 = vpop.trf.xlu0
  %v64 = vrot.slane %v48, 4
  %v65 = vmax.f32 %v48, %v64
  %v66 = vrot.slane %v65, 2
  %v67 = vmax.f32 %v65, %v66
  %v68 = vrot.slane %v67, 1
  %v69 = vmax.f32 %v67, %v68
  %v70 = vsub.f32 %v48, %v69
  %v71 = vmul.f32 %v70, 1.442695
  %v72 = vpow.pop %v71
  %v73 = vrot.slane %v72, 4
  %v74 = vadd.f32 %v72, %v73
  %v75 = vrot.slane %v74, 2
  %v76 = vadd.f32 %v74, %v75
  %v77 = vrot.slane %v76, 1
  %v78 = vadd.f32 %v76, %v77
  %v79 = vlog2.pop %v78
  %v80 = vmul.f32 %v79, 0.6931472
  %v81 = vsub.f32 %v70, %v80
  %83 = vset.pattern.permute.xlu0 0
  %84 = vperm.xlu0 %83, %v15
  %v85 = vpop.permute.xlu0 %84
  %vm87 = vcmask 64512
  %v89 = vsel %vm87, %v14, 0
  %91 = vmatprep.subr.mxu0 0.0
  %92 = vmatpush1.msra.mxu0 0.0
  %93 = vmatprep.subr.mxu0 0.0
  %94 = vmatpush1.msra.mxu0 0.0
  %95 = vmatprep.subr.mxu0 0.0
  %96 = vmatpush1.msra.mxu0 0.0
  %97 = vmatprep.subr.mxu0 0.0
  %98 = vmatpush1.msra.mxu0 0.0
  %99 = vmatprep.subr.mxu0 0.0
  %100 = vmatpush1.msra.mxu0 0.0
  %101 = vmatprep.subr.mxu0 0.0
  %102 = vmatpush1.msra.mxu0 0.0
  %103 = vmatprep.subr.mxu0 0.0
  %104 = vmatpush1.msra.mxu0 0.0
  %105 = vmatprep.subr.mxu0 0.0
  %106 = vmatpush1.msra.mxu0 0.0
  %107 = vmatprep.subr.mxu0 0.0
  %108 = vmatpush1.msra.mxu0 0.0
  %109 = vmatprep.subr.mxu0 0.0
  %110 = vmatpush1.msra.mxu0 0.0
  %111 = vmatprep.subr.mxu0 0.0
  %112 = vmatpush1.msra.mxu0 0.0
  %113 = vmatprep.subr.mxu0 0.0
  %114 = vmatpush1.msra.mxu0 0.0
  %115 = vmatprep.subr.mxu0 0.0
  %116 = vmatpush1.msra.mxu0 0.0
  %117 = vmatprep.subr.mxu0 0.0
  %118 = vmatpush1.msra.mxu0 0.0
  %119 = vmatprep.subr.mxu0 0.0
  %120 = vmatpush1.msra.mxu0 0.0
  %121 = vmatprep.subr.mxu0 0.0
  %122 = vmatpush1.msra.mxu0 %v81
  %123 = vmatprep.subr.mxu0 0.0
  %124 = vmatpush2.msra.mxu0 0.0
  %125 = vmatprep.subr.mxu0 0.0
  %126 = vmatpush2.msra.mxu0 0.0
  %127 = vmatprep.subr.mxu0 0.0
  %128 = vmatpush2.msra.mxu0 0.0
  %129 = vmatprep.subr.mxu0 0.0
  %130 = vmatpush2.msra.mxu0 0.0
  %131 = vmatprep.subr.mxu0 0.0
  %132 = vmatpush2.msra.mxu0 0.0
  %133 = vmatprep.subr.mxu0 0.0
  %134 = vmatpush2.msra.mxu0 0.0
  %135 = vmatprep.subr.mxu0 0.0
  %136 = vmatpush2.msra.mxu0 0.0
  %137 = vmatprep.subr.mxu0 0.0
  %138 = vmatpush2.msra.mxu0 0.0
  %139 = vmatprep.subr.mxu0 0.0
  %140 = vmatpush2.msra.mxu0 0.0
  %141 = vmatprep.subr.mxu0 0.0
  %142 = vmatpush2.msra.mxu0 0.0
  %143 = vmatprep.subr.mxu0 0.0
  %144 = vmatpush2.msra.mxu0 0.0
  %145 = vmatprep.subr.mxu0 0.0
  %146 = vmatpush2.msra.mxu0 0.0
  %147 = vmatprep.subr.mxu0 0.0
  %148 = vmatpush2.msra.mxu0 0.0
  %149 = vmatprep.subr.mxu0 0.0
  %150 = vmatpush2.msra.mxu0 0.0
  %151 = vmatprep.subr.mxu0 0.0
  %152 = vmatpush2.msra.mxu0 0.0
  %153 = vmatprep.subr.mxu0 0.0
  %154 = vmatpush2.msra.mxu0 0.0
  %155 = vmatprep.mubr.f32.mxu0 0.0
  %156 = vmatmul.mubr.f32.gmra.mxu0 %v89
  %v157 = vpop.f32.mrf.mxu0
  %v158 = vadd.f32 %v85, %v157
  %v159 = vpop.f32.mrf.mxu0
  %160 = vdwg.mxu0
  %v161 = vrot.slane %v158, 4
  %v162 = vmax.f32 %v158, %v161
  %v163 = vrot.slane %v162, 2
  %v164 = vmax.f32 %v162, %v163
  %v165 = vrot.slane %v164, 1
  %v166 = vmax.f32 %v164, %v165
  %v167 = vsub.f32 %v158, %v166
  %v168 = vmul.f32 %v167, 1.442695
  %v169 = vpow.pop %v168
  %v170 = vrot.slane %v169, 4
  %v171 = vadd.f32 %v169, %v170
  %v172 = vrot.slane %v171, 2
  %v173 = vadd.f32 %v171, %v172
  %v174 = vrot.slane %v173, 1
  %v175 = vadd.f32 %v173, %v174
  %v176 = vrcp.pop %v175
  %v177 = vmul.f32 1.0, %v176
  %v178 = vlaneseq
  %v179 = vshrl.u32 %v178, 7
  %vm180 = vcmp.eq.f32.partialorder %v158, %v166
  %v181 = vsel %vm180, %v179, 8
  %v182 = vrot.slane %v181, 4
  %vm183 = vcmp.lt.s32.totalorder %v181, %v182
  %v184 = vsel %vm183, %v181, %v182
  %v185 = vrot.slane %v184, 2
  %vm186 = vcmp.lt.s32.totalorder %v184, %v185
  %v187 = vsel %vm186, %v184, %v185
  %v188 = vrot.slane %v187, 1
  %vm189 = vcmp.lt.s32.totalorder %v187, %v188
  %v190 = vsel %vm189, %v187, %v188
  %v191 = vcvt.s32.f32 %v190
  %vm192 = vcmask 1040384
  %v193 = vsel %vm192, %v177, %v191
  %194 = vst [vmem:[%s3] sm:$0x3] %v193
  // Predicated region
  $region14: #{dirichlet_forward.1} parent=0 // pred_check
    _
  $region15: #{dirichlet_forward.1} parent=0 // pred_check_branch
    %196 = sbr.rel (0) target = $region17
  $region16: #{dirichlet_forward.1} parent=0 // pred_region
    _
  $region17: #{dirichlet_forward.1} parent=0 // pred_fallthru
    _
  // Predicated region
  $region18: #{dirichlet_forward.1} parent=0 // pred_check
    _
  $region19: #{dirichlet_forward.1} parent=0 // pred_check_branch
    %198 = sbr.rel (0) target = $region21
  $region20: #{dirichlet_forward.1} parent=0 // pred_region
    _
  $region21: #{dirichlet_forward.1} parent=0 // pred_fallthru
    _

</llo_original>
